<compile_context>
chip_gen: v6e
topology: v6e:2x2x1
jax: 0.10.0
libtpu: 0.0.40
codegen_flags: <defaults>
</compile_context>

<pallas_src>
import jax
import jax.numpy as jnp
from jax.experimental import pallas as pl
from jax.experimental.pallas import tpu as pltpu


def _round_up(x, m):
    return ((x + m - 1) // m) * m


def _matmul_kernel(x_ref, w_ref, o_ref):
    """x_ref: (TM, K), w_ref: (K, TN), o_ref: (TM, TN). One MXU matmul per tile."""
    o_ref[...] = jnp.dot(
        x_ref[...], w_ref[...], preferred_element_type=jnp.float32
    ).astype(o_ref.dtype)


def prompt_gen_forward(x, proj, *, n_ctx, out_dim, mode):
    """Pallas implementation of PromptGen.forward.

    x:    (N, D_in)  task (or task||cls) features
    proj: (D_eff, n_ctx * out_dim)  parameter
    returns (N, n_ctx, out_dim) in x.dtype
    """
    N, D_in = x.shape
    D_eff, M = proj.shape
    assert M == n_ctx * out_dim

    # --- fold mode-specific preprocessing into x (NOT into the weights) ---
    if mode == "lin":
        assert D_eff == D_in, "lin: proj rows must equal x feature dim"
        x_eff = x
    elif mode == "linmean":
        assert D_in % 2 == 0 and D_eff == D_in // 2, "linmean: proj rows must be D_in//2"
        x_eff = (x[:, :D_eff] + x[:, D_eff:]) * 0.5
    elif mode == "lincls":
        assert D_in % 2 == 0 and D_eff == D_in // 2, "lincls: proj rows must be D_in//2"
        x_eff = x[:, :D_eff]
    else:
        raise NotImplementedError(mode)

    K = D_eff
    # proj.type(x.dtype) from the torch module, done once in the wrapper.
    w = proj.astype(x.dtype)

    itemsize = jnp.dtype(x.dtype).itemsize
    sublane = 8 * max(1, 4 // itemsize)          # 8 (f32), 16 (bf16), 32 (int8)
    m_pad = _round_up(M, 128)                    # lane-dense output, no tn re-rounding
    n_sub = _round_up(N, sublane)

    DB = 2                                       # BlockSpec double-buffer factor
    VMEM_BUDGET = 12 * 1024 * 1024               # safe on v5e (16 MiB scoped default),
                                                 # v6e (32/128) and v7x (32/64 MiB)

    def vmem_bytes(tm_, tn_):
        return DB * (tm_ * K + K * tn_ + tm_ * tn_) * itemsize

    if vmem_bytes(n_sub, m_pad) <= VMEM_BUDGET:
        # Fast path: whole problem resident in VMEM -> a single grid step.
        n_pad, tm, tn = n_sub, n_sub, m_pad
        grid = (1,)
        x_map = lambda i: (0, 0)
        w_map = lambda i: (0, 0)
        o_map = lambda i: (0, 0)
        dims = ("arbitrary",)
    else:
        # Tile N with a big MXU-friendly tile (256 feeds the v6e/v7x 256x256 MXU).
        if n_sub >= 512:
            tm = 256
        elif n_sub >= 128:
            tm = 128
        else:
            tm = n_sub
        n_pad = _round_up(n_sub, tm)

        if vmem_bytes(tm, m_pad) <= VMEM_BUDGET:
            # Weight fully VMEM-resident over M: the big operand is read exactly
            # once; only the (small) x tiles are streamed.
            tn = m_pad
            grid = (n_pad // tm,)
            x_map = lambda i: (i, 0)
            w_map = lambda i: (0, 0)
            o_map = lambda i: (i, 0)
            dims = ("parallel",)
        else:
            # Tile M too; put j (M) on the OUTER axis so the weight slab is
            # streamed once and the small x tile is the operand re-fetched.
            tn = 512
            while tn > 128 and (m_pad % tn != 0 or vmem_bytes(tm, tn) > VMEM_BUDGET):
                tn //= 2
            # TODO(synk): add a K grid axis ("arbitrary") with an f32 VMEM
            # accumulator if D_eff ever grows large enough to blow this budget.
            grid = (m_pad // tn, n_pad // tm)
            x_map = lambda j, i: (i, 0)
            w_map = lambda j, i: (0, j)
            o_map = lambda j, i: (i, j)
            dims = ("parallel", "parallel")

    x_p = x_eff if n_pad == N else jnp.pad(x_eff, ((0, n_pad - N), (0, 0)))
    w_p = w if m_pad == M else jnp.pad(w, ((0, 0), (0, m_pad - M)))

    cost = pl.CostEstimate(
        flops=2 * n_pad * K * m_pad,
        transcendentals=0,
        bytes_accessed=(n_pad * K + K * m_pad + n_pad * m_pad) * itemsize,
    )

    out = pl.pallas_call(
        _matmul_kernel,
        out_shape=jax.ShapeDtypeStruct((n_pad, m_pad), x.dtype),
        grid=grid,
        in_specs=[
            pl.BlockSpec((tm, K), x_map),       # K always resident per tile
            pl.BlockSpec((K, tn), w_map),
        ],
        out_specs=pl.BlockSpec((tm, tn), o_map),
        compiler_params=pltpu.CompilerParams(
            dimension_semantics=dims,
            vmem_limit_bytes=32 * 1024 * 1024,
        ),
        cost_estimate=cost,
    )(x_p, w_p)

    if n_pad != N:
        out = out[:N]          # row slice: contiguous, cheap
    if m_pad != M:
        out = out[:, :M]       # only when M is not already a multiple of 128
    return out.reshape(N, n_ctx, out_dim)


def prompt_gen_reference(x, proj, *, n_ctx, out_dim, mode):
    """Pure-JAX reference mirroring the PyTorch forward."""
    w = proj.astype(x.dtype)
    if mode == "lin":
        ctx = x @ w
    elif mode == "linmean":
        d = x.shape[-1]
        ctx = ((x[..., : d // 2] + x[..., d // 2:]) / 2.0) @ w
    elif mode == "lincls":
        d = x.shape[-1]
        ctx = x[..., : d // 2] @ w
    else:
        raise NotImplementedError(mode)
    return ctx.reshape(x.shape[0], n_ctx, out_dim)


if __name__ == "__main__":
    dtype = jnp.float32

    def run_case(key, num_tasks, feat_dim, n_ctx, out_dim, mode):
        kx, kw = jax.random.split(key)
        d_in = 2 * feat_dim                       # is_csc=True: task || cls feats
        x = jax.random.normal(kx, (num_tasks, d_in), dtype=dtype)
        d_eff = d_in if mode == "lin" else feat_dim
        # nn.init.normal_(std=0.02) on the zeros parameter.
        proj = 0.02 * jax.random.normal(kw, (d_eff, n_ctx * out_dim), dtype=jnp.float32)

        got = prompt_gen_forward(x, proj, n_ctx=n_ctx, out_dim=out_dim, mode=mode)
        got = jax.block_until_ready(got)
        ref = prompt_gen_reference(x, proj, n_ctx=n_ctx, out_dim=out_dim, mode=mode)

        shape_ok = got.shape == (num_tasks, n_ctx, out_dim)
        close = bool(jnp.allclose(got, ref, atol=1e-3, rtol=1e-3))
        return shape_ok and close

    cases = [
        # (num_tasks, feat_dim, n_ctx, out_dim)
        (8, 64, 4, 32),       # aligned toy shape (D_in=128, M=128) -> fast path
        (10, 40, 3, 24),      # ragged shape -> exercises N / M padding
        (300, 128, 4, 128),   # N=300 -> still whole-in-VMEM single step
        (16, 256, 8, 512),    # M=4096 -> exercises weight-resident / M-tiled paths
    ]

    keys = jax.random.split(jax.random.PRNGKey(0), len(cases) * 3)
    ok = True
    k = 0
    for (num_tasks, feat_dim, n_ctx, out_dim) in cases:
        for mode in ("lin", "linmean", "lincls"):
            ok = ok and run_case(keys[k], num_tasks, feat_dim, n_ctx, out_dim, mode)
            k += 1

    if ok:
        print("KERNEL_OK")
    else:
        print("KERNEL_MISMATCH")
</pallas_src>

<mosaic_0001>
module attributes {stable_mosaic.version = 11 : i64} {
  func.func @_matmul_kernel(%arg0: i32, %arg1: memref<8x128xf32, #tpu.memory_space<vmem>>, %arg2: memref<128x128xf32, #tpu.memory_space<vmem>>, %arg3: memref<8x128xf32, #tpu.memory_space<vmem>>) attributes {dimension_semantics = [#tpu.dimension_semantics<arbitrary>], iteration_bounds = array<i64: 1>, scalar_prefetch = 0 : i64, scratch_operands = 0 : i64, tpu.core_type = #tpu.core_type<tc>, window_params = [{pipeline_mode = #tpu.pipeline_mode<synchronous>, transform_indices = @transform_0, window_bounds = array<i64: 8, 128>}, {pipeline_mode = #tpu.pipeline_mode<synchronous>, transform_indices = @transform_1, window_bounds = array<i64: 128, 128>}, {pipeline_mode = #tpu.pipeline_mode<synchronous>, transform_indices = @transform_2, window_bounds = array<i64: 8, 128>}]} {
    %c0 = arith.constant 0 : index
    %c0_0 = arith.constant 0 : index
    %0 = vector.load %arg1[%c0, %c0_0] : memref<8x128xf32, #tpu.memory_space<vmem>>, vector<8x128xf32>
    %c0_1 = arith.constant 0 : index
    %c0_2 = arith.constant 0 : index
    %1 = vector.load %arg2[%c0_1, %c0_2] : memref<128x128xf32, #tpu.memory_space<vmem>>, vector<128x128xf32>
    %cst = arith.constant dense<0.000000e+00> : vector<8x128xf32>
    %2 = tpu.matmul %0, %1, %cst {dimension_numbers = #tpu.dot_dimension_numbers<[1], [0], [0], [1], [0, 0, 1, 1], [], []>} : vector<8x128xf32>, vector<128x128xf32>, vector<8x128xf32> -> vector<8x128xf32>
    %c0_3 = arith.constant 0 : index
    %c0_4 = arith.constant 0 : index
    %3 = vector.load %arg3[%c0_3, %c0_4] : memref<8x128xf32, #tpu.memory_space<vmem>>, vector<8x128xf32>
    tpu.vector_store %arg3[%c0_3, %c0_4], %2 {strides = array<i32>} : memref<8x128xf32, #tpu.memory_space<vmem>>, vector<8x128xf32>,
    return
  }
  func.func @transform_0(%arg0: i32) -> (i32, i32) {
    %c0_i32 = arith.constant 0 : i32
    %c0_i32_0 = arith.constant 0 : i32
    %c0_i32_1 = arith.constant 0 : i32
    return %c0_i32, %c0_i32_0 : i32, i32
  }
  func.func @transform_1(%arg0: i32) -> (i32, i32) {
    %c0_i32 = arith.constant 0 : i32
    %c0_i32_0 = arith.constant 0 : i32
    %c0_i32_1 = arith.constant 0 : i32
    return %c0_i32, %c0_i32_0 : i32, i32
  }
  func.func @transform_2(%arg0: i32) -> (i32, i32) {
    %c0_i32 = arith.constant 0 : i32
    %c0_i32_0 = arith.constant 0 : i32
    %c0_i32_1 = arith.constant 0 : i32
    return %c0_i32, %c0_i32_0 : i32, i32
  }
}

</mosaic_0001>

<llo_original>
// kernel: tpu_custom_call.1
$region0: #{tpu_custom_call.1}
  #allocation0 [shape = 'u32[]', space=smem, size = 0x4, offset = 0x4, fixed_abs, tag = 'smem constant byte address 0x4 - core index']
  #allocation1 [shape = 'u32[144,128]{1,0:T(1,128)}', space=vmem, size = 0x12000, scoped, tag = 'internal scratch']
  %s0 = inlined_call_operand.hbm [shape: f32[8,128], index: 0, kind: input, shape index: {}]
  %s1 = inlined_call_operand.hbm [shape: f32[128,128], index: 1, kind: input, shape index: {}]
  %s2 = inlined_call_operand.hbm [shape: f32[8,128], index: 2, kind: output, shape index: {}]
  %s3 = sld [smem:[#allocation0]]
  $region26: #{tpu_custom_call.1} parent=0
    _
  %s5 = ssub.s32 1, %s3
  %s6 = scalar_select 0, %s5, %s3
  $region1: #{tpu_custom_call.1} parent=0
    #allocation2 [shape = 'u8[4096]{0}', space=vmem, size = 0x1000, scoped, tag = 'input window, operand 0, single buffered']
    #allocation3 [shape = 's32[1]{0}', space=sflag, size = 0x4, scoped, tag = 'scoped memory for tpu_custom_call.1']
    #allocation4 [shape = 's32[1]{0}', space=sflag, size = 0x4, scoped, tag = 'scoped memory for tpu_custom_call.1']
    #allocation5 [shape = 'u8[65536]{0}', space=vmem, size = 0x10000, scoped, tag = 'input window, operand 1, single buffered']
    #allocation6 [shape = 's32[1]{0}', space=sflag, size = 0x4, scoped, tag = 'scoped memory for tpu_custom_call.1']
    #allocation7 [shape = 'u8[4096]{0}', space=vmem, size = 0x1000, scoped, tag = 'output window, operand 0, single buffered']
    %7 = vsyncpa [#allocation3], 0
    %8 = vsyncpa [#allocation6], 0
    %9 = vsyncpa [#allocation4], 0
    // Predicated region
    $region2: #{tpu_custom_call.1} parent=1 // pred_check
      _
    $region3: #{tpu_custom_call.1} parent=1 // pred_check_branch
      %11 = sbr.rel (0) target = $region5
    $region4: #{tpu_custom_call.1} parent=1 // pred_region
      %s13 = ssub.s32 128, 128
      %14 = vsyncadd [#allocation3], %s13
      %s16 = sshll.u32 [#allocation2], 4
      %s17 = int_to_ptr.vmem [resolvable:$true] %s16
      %19 = dma.hbm_to_vmem [thread:$0]  %s0, 128, %s17, [#allocation3]
    $region5: #{tpu_custom_call.1} parent=1 // pred_fallthru
      _
    // Predicated region
    $region6: #{tpu_custom_call.1} parent=1 // pred_check
      _
    $region7: #{tpu_custom_call.1} parent=1 // pred_check_branch
      %21 = sbr.rel (0) target = $region9
    $region8: #{tpu_custom_call.1} parent=1 // pred_region
      %s23 = ssub.s32 2048, 2048
      %24 = vsyncadd [#allocation6], %s23
      %s25 = sshll.u32 [#allocation5], 4
      %s26 = int_to_ptr.vmem [resolvable:$true] %s25
      %31 = dma.hbm_to_vmem [thread:$0]  %s1, 2048, %s26, [#allocation6], 128, 128, 8
    $region9: #{tpu_custom_call.1} parent=1 // pred_fallthru
      _
    // Predicated region
    $region10: #{tpu_custom_call.1} parent=1 // pred_check
      _
    $region11: #{tpu_custom_call.1} parent=1 // pred_check_branch
      %33 = sbr.rel (0) target = $region13
    $region12: #{tpu_custom_call.1} parent=1 // pred_region
      %34 = dma.done [#allocation3], 128
    $region13: #{tpu_custom_call.1} parent=1 // pred_fallthru
      _
    // Predicated region
    $region14: #{tpu_custom_call.1} parent=1 // pred_check
      _
    $region15: #{tpu_custom_call.1} parent=1 // pred_check_branch
      %36 = sbr.rel (0) target = $region17
    $region16: #{tpu_custom_call.1} parent=1 // pred_region
      %37 = dma.done [#allocation6], 2048
    $region17: #{tpu_custom_call.1} parent=1 // pred_fallthru
      _
    %v38 = vld [vmem:[#allocation2] sm:$0xff]
    %v39 = vld [vmem:[#allocation5] sm:$0xff]
    %v40 = vld [vmem:[#allocation5 + $0x8] sm:$0xff]
    %v41 = vld [vmem:[#allocation5 + $0x10] sm:$0xff]
    %v42 = vld [vmem:[#allocation5 + $0x18] sm:$0xff]
    %v43 = vld [vmem:[#allocation5 + $0x20] sm:$0xff]
    %v44 = vld [vmem:[#allocation5 + $0x28] sm:$0xff]
    %v45 = vld [vmem:[#allocation5 + $0x30] sm:$0xff]
    %v46 = vld [vmem:[#allocation5 + $0x38] sm:$0xff]
    %v47 = vld [vmem:[#allocation5 + $0x40] sm:$0xff]
    %v48 = vld [vmem:[#allocation5 + $0x48] sm:$0xff]
    %v49 = vld [vmem:[#allocation5 + $0x50] sm:$0xff]
    %v50 = vld [vmem:[#allocation5 + $0x58] sm:$0xff]
    %v51 = vld [vmem:[#allocation5 + $0x60] sm:$0xff]
    %v52 = vld [vmem:[#allocation5 + $0x68] sm:$0xff]
    %v53 = vld [vmem:[#allocation5 + $0x70] sm:$0xff]
    %v54 = vld [vmem:[#allocation5 + $0x78] sm:$0xff]
    %55 = vmatprep.subr.mxu0 0.0
    %56 = vmatpush1.msra.mxu0 %v54
    %57 = vmatprep.subr.mxu0 0.0
    %58 = vmatpush1.msra.mxu0 %v53
    %59 = vmatprep.subr.mxu0 0.0
    %60 = vmatpush1.msra.mxu0 %v52
    %61 = vmatprep.subr.mxu0 0.0
    %62 = vmatpush1.msra.mxu0 %v51
    %63 = vmatprep.subr.mxu0 0.0
    %64 = vmatpush1.msra.mxu0 %v50
    %65 = vmatprep.subr.mxu0 0.0
    %66 = vmatpush1.msra.mxu0 %v49
    %67 = vmatprep.subr.mxu0 0.0
    %68 = vmatpush1.msra.mxu0 %v48
    %69 = vmatprep.subr.mxu0 0.0
    %70 = vmatpush1.msra.mxu0 %v47
    %71 = vmatprep.subr.mxu0 0.0
    %72 = vmatpush1.msra.mxu0 %v46
    %73 = vmatprep.subr.mxu0 0.0
    %74 = vmatpush1.msra.mxu0 %v45
    %75 = vmatprep.subr.mxu0 0.0
    %76 = vmatpush1.msra.mxu0 %v44
    %77 = vmatprep.subr.mxu0 0.0
    %78 = vmatpush1.msra.mxu0 %v43
    %79 = vmatprep.subr.mxu0 0.0
    %80 = vmatpush1.msra.mxu0 %v42
    %81 = vmatprep.subr.mxu0 0.0
    %82 = vmatpush1.msra.mxu0 %v41
    %83 = vmatprep.subr.mxu0 0.0
    %84 = vmatpush1.msra.mxu0 %v40
    %85 = vmatprep.subr.mxu0 0.0
    %86 = vmatpush1.msra.mxu0 %v39
    %87 = vmatprep.subr.mxu0 0.0
    %88 = vmatpush2.msra.mxu0 0.0
    %89 = vmatprep.subr.mxu0 0.0
    %90 = vmatpush2.msra.mxu0 0.0
    %91 = vmatprep.subr.mxu0 0.0
    %92 = vmatpush2.msra.mxu0 0.0
    %93 = vmatprep.subr.mxu0 0.0
    %94 = vmatpush2.msra.mxu0 0.0
    %95 = vmatprep.subr.mxu0 0.0
    %96 = vmatpush2.msra.mxu0 0.0
    %97 = vmatprep.subr.mxu0 0.0
    %98 = vmatpush2.msra.mxu0 0.0
    %99 = vmatprep.subr.mxu0 0.0
    %100 = vmatpush2.msra.mxu0 0.0
    %101 = vmatprep.subr.mxu0 0.0
    %102 = vmatpush2.msra.mxu0 0.0
    %103 = vmatprep.subr.mxu0 0.0
    %104 = vmatpush2.msra.mxu0 0.0
    %105 = vmatprep.subr.mxu0 0.0
    %106 = vmatpush2.msra.mxu0 0.0
    %107 = vmatprep.subr.mxu0 0.0
    %108 = vmatpush2.msra.mxu0 0.0
    %109 = vmatprep.subr.mxu0 0.0
    %110 = vmatpush2.msra.mxu0 0.0
    %111 = vmatprep.subr.mxu0 0.0
    %112 = vmatpush2.msra.mxu0 0.0
    %113 = vmatprep.subr.mxu0 0.0
    %114 = vmatpush2.msra.mxu0 0.0
    %115 = vmatprep.subr.mxu0 0.0
    %116 = vmatpush2.msra.mxu0 0.0
    %117 = vmatprep.subr.mxu0 0.0
    %118 = vmatpush2.msra.mxu0 0.0
    %119 = vmatprep.mubr.f32.mxu0 0.0
    %120 = vmatmul.mubr.f32.gmra.mxu0 %v38
    %v121 = vpop.f32.mrf.mxu0
    %v122 = vadd.f32 0.0, %v121
    %v123 = vpop.f32.mrf.mxu0
    %124 = vdwg.mxu0
    %125 = vst [vmem:[#allocation7] sm:$0xff] %v122
    // Predicated region
    $region18: #{tpu_custom_call.1} parent=1 // pred_check
      _
    $region19: #{tpu_custom_call.1} parent=1 // pred_check_branch
      %127 = sbr.rel (0) target = $region21
    $region20: #{tpu_custom_call.1} parent=1 // pred_region
      %s129 = ssub.s32 128, 128
      %130 = vsyncadd [#allocation4], %s129
      %s132 = sshll.u32 [#allocation7], 4
      %s133 = int_to_ptr.vmem [resolvable:$true] %s132
      %135 = dma.vmem_to_hbm [thread:$0]  %s133, 128, %s2, [#allocation4]
    $region21: #{tpu_custom_call.1} parent=1 // pred_fallthru
      _
    // Predicated region
    $region22: #{tpu_custom_call.1} parent=1 // pred_check
      _
    $region23: #{tpu_custom_call.1} parent=1 // pred_check_branch
      %137 = sbr.rel (0) target = $region25
    $region24: #{tpu_custom_call.1} parent=1 // pred_region
      %138 = dma.done [#allocation4], 128
    $region25: #{tpu_custom_call.1} parent=1 // pred_fallthru
      _
    %139 = vsyncpa [#allocation3], 1
    %140 = vsyncpa [#allocation6], 1
    %141 = vsyncpa [#allocation4], 1

</llo_original>
